<compile_context>
chip_gen: v7x
topology: tpu7x:2x2x1
jax: 0.10.0
libtpu: 0.0.40
codegen_flags: <defaults>
</compile_context>

<pallas_src>
import functools
import math

import jax
import jax.numpy as jnp
from jax.experimental import pallas as pl
from jax.experimental.pallas import tpu as pltpu


def _round_up(n, m):
    return ((n + m - 1) // m) * m


def _pick_tile(total, unit, cap):
    """Largest multiple of `unit` that divides `total` and is <= cap (total % unit == 0)."""
    cap = max(unit, min(cap, total))
    best = unit
    for cand in range(unit, cap + 1, unit):
        if total % cand == 0:
            best = cand
    return best


def _scattering_kernel(x_ref, f_ref, out_ref, acc_ref, *, scale):
    # x_ref:   [2, HWt]   row 0 = Re(x_hat), row 1 = Im(x_hat) (flattened spatial chunk)
    # f_ref:   [Ft, HWt]  |filter|^2 tile
    # out_ref: [Ft, 1]    per-filter scattering coefficients
    # acc_ref: [Ft, 1]    f32 accumulator across spatial tiles
    k = pl.program_id(1)

    @pl.when(k == 0)
    def _init():
        acc_ref[...] = jnp.zeros_like(acc_ref)

    x = x_ref[...]                           # [2, HWt]
    x2 = x * x
    p = x2[0:1, :] + x2[1:2, :]              # [1, HWt] power spectrum chunk (lane-dense)

    # MXU matvec: contract the spatial (lane) dim of both operands -> [Ft, 1].
    # Keeps everything f32 (no bf16 staging) so the mean matches the reference.
    acc_ref[...] += jax.lax.dot_general(
        f_ref[...],
        p,
        dimension_numbers=(((1,), (1,)), ((), ())),
        preferred_element_type=jnp.float32,
    )

    @pl.when(k == pl.num_programs(1) - 1)
    def _finalize():
        out_ref[...] = acc_ref[...] * scale


def prepare_filter_power(phi_hat_real, phi_hat_imag, psi_hat_real, psi_hat_imag):
    """Hoistable filter preprocessing: one lane-dense, padded |filter|^2 slab.

    Returns (fpow_padded [F_pad, HW_pad], (H, W, F)).
    Row 0 is phi, rows 1..J*L are psi in row-major (j, l) order (matches b.flatten()).
    """
    H, W = phi_hat_real.shape
    J, L = psi_hat_real.shape[0], psi_hat_real.shape[1]
    F = 1 + J * L
    HW = H * W

    phi_r = phi_hat_real.astype(jnp.float32)
    phi_i = phi_hat_imag.astype(jnp.float32)
    psi_r = psi_hat_real.astype(jnp.float32)
    psi_i = psi_hat_imag.astype(jnp.float32)

    phi_pow = (phi_r * phi_r + phi_i * phi_i).reshape(1, HW)
    psi_pow = (psi_r * psi_r + psi_i * psi_i).reshape(J * L, HW)
    fpow = jnp.concatenate([phi_pow, psi_pow], axis=0)          # [F, HW]

    F_pad = _round_up(F, 8)
    HW_pad = _round_up(HW, 128)
    fpow = jnp.pad(fpow, ((0, F_pad - F), (0, HW_pad - HW)))    # zero rows/cols -> contribute 0
    return fpow, (H, W, F)


def scattering_2d_1layer_apply(x_hat, fpow_padded, H, W, F,
                               *, max_filter_tile=32, max_spatial_tile=8192):
    """Run the fused scattering reduction. Returns s of shape [F] (= 1 + J*L), float32."""
    HW = H * W
    F_pad, HW_pad = fpow_padded.shape

    # Lane-dense x layout: [2, HW] (re / im rows), zero-padded to HW_pad.
    x2 = jnp.moveaxis(x_hat.astype(jnp.float32), 2, 0).reshape(2, HW)
    x2 = jnp.pad(x2, ((0, 0), (0, HW_pad - HW)))

    Ft = _pick_tile(F_pad, 8, max_filter_tile)
    HWt = _pick_tile(HW_pad, 128, max_spatial_tile)
    grid = (F_pad // Ft, HW_pad // HWt)

    scale = 1.0 / (float(HW) * (2.0 * math.pi) ** 2)            # mean over true H*W + 1/(2pi)^2
    kernel = functools.partial(_scattering_kernel, scale=scale)

    out = pl.pallas_call(
        kernel,
        out_shape=jax.ShapeDtypeStruct((F_pad, 1), jnp.float32),
        grid_spec=pltpu.PrefetchScalarGridSpec(
            num_scalar_prefetch=0,
            grid=grid,
            in_specs=[
                pl.BlockSpec((2, HWt), lambda f, k: (0, k)),      # x chunk (same for all f)
                pl.BlockSpec((Ft, HWt), lambda f, k: (f, k)),     # filter power tile
            ],
            out_specs=pl.BlockSpec((Ft, 1), lambda f, k: (f, 0)),
            scratch_shapes=[pltpu.VMEM((Ft, 1), jnp.float32)],
        ),
        compiler_params=pltpu.CompilerParams(
            dimension_semantics=("parallel", "arbitrary"),        # filters parallel, spatial reduce
            vmem_limit_bytes=32 * 1024 * 1024,
        ),
    )(x2, fpow_padded)

    return out[:F, 0]


def scattering_2d_1layer(x_hat, phi_hat_real, phi_hat_imag, psi_hat_real, psi_hat_imag,
                         *, max_filter_tile=32, max_spatial_tile=8192):
    """Convenience one-shot wrapper (filter prep + apply)."""
    fpow, (H, W, F) = prepare_filter_power(phi_hat_real, phi_hat_imag,
                                           psi_hat_real, psi_hat_imag)
    return scattering_2d_1layer_apply(x_hat, fpow, H, W, F,
                                      max_filter_tile=max_filter_tile,
                                      max_spatial_tile=max_spatial_tile)


def _reference(x_hat, phi_r, phi_i, psi_r, psi_i):
    p = x_hat[:, :, 0] ** 2 + x_hat[:, :, 1] ** 2
    scale = 1.0 / (2.0 * math.pi) ** 2
    a = scale * jnp.mean(p * (phi_r ** 2 + phi_i ** 2))
    b = scale * jnp.mean(p[None, None, :, :] * (psi_r ** 2 + psi_i ** 2), axis=(2, 3))
    return jnp.concatenate([a[None], b.reshape(-1)], axis=0)


if __name__ == "__main__":
    # Small, deterministic shapes consistent with the module:
    #   x_hat:     [H, W, 2]      phi_hat_*: [H, W]      psi_hat_*: [J, L, H, W]
    H, W = 16, 16
    J, L = 3, 4

    key = jax.random.PRNGKey(0)
    k_x, k_pr, k_pi, k_sr, k_si = jax.random.split(key, 5)
    x_hat = jax.random.normal(k_x, (H, W, 2), dtype=jnp.float32)
    phi_hat_real = jax.random.normal(k_pr, (H, W), dtype=jnp.float32)
    phi_hat_imag = jax.random.normal(k_pi, (H, W), dtype=jnp.float32)
    psi_hat_real = jax.random.normal(k_sr, (J, L, H, W), dtype=jnp.float32)
    psi_hat_imag = jax.random.normal(k_si, (J, L, H, W), dtype=jnp.float32)

    s_ref = _reference(x_hat, phi_hat_real, phi_hat_imag, psi_hat_real, psi_hat_imag)

    # 1) Default tiling (single block for this toy size).
    s_default = scattering_2d_1layer(x_hat, phi_hat_real, phi_hat_imag,
                                     psi_hat_real, psi_hat_imag)
    s_default = jax.block_until_ready(s_default)

    # 2) Small tiles so the real 2-D grid (filter-parallel x spatial-reduction with
    #    accumulator init/finalize) is actually exercised: grid = (2, 2).
    s_tiled = scattering_2d_1layer(x_hat, phi_hat_real, phi_hat_imag,
                                   psi_hat_real, psi_hat_imag,
                                   max_filter_tile=8, max_spatial_tile=128)
    s_tiled = jax.block_until_ready(s_tiled)

    assert s_default.shape == (1 + J * L,)
    assert s_tiled.shape == (1 + J * L,)
    assert jnp.allclose(s_default, s_ref, rtol=1e-4, atol=1e-6), (s_default, s_ref)
    assert jnp.allclose(s_tiled, s_ref, rtol=1e-4, atol=1e-6), (s_tiled, s_ref)

    print("KERNEL_OK")
</pallas_src>

<mosaic_0001>
module attributes {stable_mosaic.version = 11 : i64} {
  func.func @_scattering_kernel(%arg0: i32, %arg1: i32, %arg2: memref<2x256xf32, #tpu.memory_space<vmem>>, %arg3: memref<16x256xf32, #tpu.memory_space<vmem>>, %arg4: memref<16x1xf32, #tpu.memory_space<vmem>>, %arg5: memref<16x1xf32, #tpu.memory_space<vmem>>) attributes {dimension_semantics = [#tpu.dimension_semantics<parallel>, #tpu.dimension_semantics<arbitrary>], iteration_bounds = array<i64: 1, 1>, scalar_prefetch = 0 : i64, scratch_operands = 1 : i64, tpu.core_type = #tpu.core_type<tc>, window_params = [{transform_indices = @transform_0, window_bounds = array<i64: 2, 256>}, {transform_indices = @transform_1, window_bounds = array<i64: 16, 256>}, {transform_indices = @transform_2, window_bounds = array<i64: 16, 1>}]} {
    %c0_i32 = arith.constant 0 : i32
    %0 = arith.cmpi eq, %arg1, %c0_i32 : i32
    %1 = arith.extui %0 : i1 to i32
    %c0_i32_0 = arith.constant 0 : i32
    %2 = arith.cmpi ne, %1, %c0_i32_0 : i32
    scf.if %2 {
      %cst_10 = arith.constant 0.000000e+00 : f32
      %16 = vector.broadcast %cst_10 : f32 to vector<16x1xf32>
      %c0_11 = arith.constant 0 : index
      %c0_12 = arith.constant 0 : index
      %17 = vector.load %arg5[%c0_11, %c0_12] : memref<16x1xf32, #tpu.memory_space<vmem>>, vector<16x1xf32>
      tpu.vector_store %arg5[%c0_11, %c0_12], %16 {strides = array<i32>} : memref<16x1xf32, #tpu.memory_space<vmem>>, vector<16x1xf32>,
    } else {
    }
    %c0 = arith.constant 0 : index
    %c0_1 = arith.constant 0 : index
    %3 = vector.load %arg2[%c0, %c0_1] : memref<2x256xf32, #tpu.memory_space<vmem>>, vector<2x256xf32>
    %4 = arith.mulf %3, %3 : vector<2x256xf32>
    %5 = vector.extract_strided_slice %4 {offsets = [0, 0], sizes = [1, 256], strides = [1, 1]} : vector<2x256xf32> to vector<1x256xf32>
    %6 = vector.extract_strided_slice %4 {offsets = [1, 0], sizes = [1, 256], strides = [1, 1]} : vector<2x256xf32> to vector<1x256xf32>
    %7 = arith.addf %5, %6 : vector<1x256xf32>
    %c0_2 = arith.constant 0 : index
    %c0_3 = arith.constant 0 : index
    %8 = vector.load %arg5[%c0_2, %c0_3] : memref<16x1xf32, #tpu.memory_space<vmem>>, vector<16x1xf32>
    %c0_4 = arith.constant 0 : index
    %c0_5 = arith.constant 0 : index
    %9 = vector.load %arg3[%c0_4, %c0_5] : memref<16x256xf32, #tpu.memory_space<vmem>>, vector<16x256xf32>
    %cst = arith.constant dense<0.000000e+00> : vector<16x1xf32>
    %10 = tpu.matmul %9, %7, %cst {dimension_numbers = #tpu.dot_dimension_numbers<[1], [1], [0], [0], [0, 0, 1, 0], [], []>} : vector<16x256xf32>, vector<1x256xf32>, vector<16x1xf32> -> vector<16x1xf32>
    %11 = arith.addf %8, %10 : vector<16x1xf32>
    %c0_6 = arith.constant 0 : index
    %c0_7 = arith.constant 0 : index
    %12 = vector.load %arg5[%c0_6, %c0_7] : memref<16x1xf32, #tpu.memory_space<vmem>>, vector<16x1xf32>
    tpu.vector_store %arg5[%c0_6, %c0_7], %11 {strides = array<i32>} : memref<16x1xf32, #tpu.memory_space<vmem>>, vector<16x1xf32>,
    %c0_i32_8 = arith.constant 0 : i32
    %13 = arith.cmpi eq, %arg1, %c0_i32_8 : i32
    %14 = arith.extui %13 : i1 to i32
    %c0_i32_9 = arith.constant 0 : i32
    %15 = arith.cmpi ne, %14, %c0_i32_9 : i32
    scf.if %15 {
      %c0_10 = arith.constant 0 : index
      %c0_11 = arith.constant 0 : index
      %16 = vector.load %arg5[%c0_10, %c0_11] : memref<16x1xf32, #tpu.memory_space<vmem>>, vector<16x1xf32>
      %cst_12 = arith.constant 9.89464679E-5 : f32
      %17 = vector.broadcast %cst_12 : f32 to vector<16x1xf32>
      %18 = arith.mulf %16, %17 : vector<16x1xf32>
      %c0_13 = arith.constant 0 : index
      %c0_14 = arith.constant 0 : index
      %19 = vector.load %arg4[%c0_13, %c0_14] : memref<16x1xf32, #tpu.memory_space<vmem>>, vector<16x1xf32>
      tpu.vector_store %arg4[%c0_13, %c0_14], %18 {strides = array<i32>} : memref<16x1xf32, #tpu.memory_space<vmem>>, vector<16x1xf32>,
    } else {
    }
    return
  }
  func.func @transform_0(%arg0: i32, %arg1: i32) -> (i32, i32) {
    %c0_i32 = arith.constant 0 : i32
    %c0_i32_0 = arith.constant 0 : i32
    return %c0_i32, %arg1 : i32, i32
  }
  func.func @transform_1(%arg0: i32, %arg1: i32) -> (i32, i32) {
    %c0_i32 = arith.constant 0 : i32
    return %arg0, %arg1 : i32, i32
  }
  func.func @transform_2(%arg0: i32, %arg1: i32) -> (i32, i32) {
    %c0_i32 = arith.constant 0 : i32
    %c0_i32_0 = arith.constant 0 : i32
    return %arg0, %c0_i32 : i32, i32
  }
}

</mosaic_0001>

<llo_original>
// kernel: tpu_custom_call.1
$region0: #{tpu_custom_call.1}
  #allocation0 [shape = 'u32[]', space=smem, size = 0x4, offset = 0x4, fixed_abs, tag = 'smem constant byte address 0x4 - core index']
  #allocation1 [shape = 'u32[144,128]{1,0:T(1,128)}', space=vmem, size = 0x12000, scoped, tag = 'internal scratch']
  #allocation2 [shape = 'f32[16,1]{1,0:T(8,128)}', space=vmem, size = 0x2000, scoped, tag = 'scratch operand']
  %s0 = inlined_call_operand.hbm [shape: f32[2,256], index: 0, kind: input, shape index: {}]
  %s1 = inlined_call_operand.hbm [shape: f32[16,256], index: 1, kind: input, shape index: {}]
  %s2 = inlined_call_operand.vmem [shape: f32[16,1], index: 2, kind: output, shape index: {}]
  %s3 = sld [smem:[#allocation0]]
  $region34: #{tpu_custom_call.1} parent=0
    _
  %s5 = ssub.s32 1, %s3
  %s6 = scalar_select 0, %s5, %s3
  $region1: #{tpu_custom_call.1} parent=0
    #allocation3 [shape = 'u8[2048]{0}', space=vmem, size = 0x800, scoped, tag = 'input window, operand 0, single buffered']
    #allocation4 [shape = 's32[1]{0}', space=sflag, size = 0x4, scoped, tag = 'scoped memory for tpu_custom_call.1']
    #allocation5 [shape = 'u8[16384]{0}', space=vmem, size = 0x4000, scoped, tag = 'input window, operand 1, single buffered']
    #allocation6 [shape = 's32[1]{0}', space=sflag, size = 0x4, scoped, tag = 'scoped memory for tpu_custom_call.1']
    %7 = vsyncpa [#allocation4], 0
    %8 = vsyncpa [#allocation6], 0
    // Predicated region
    $region2: #{tpu_custom_call.1} parent=1 // pred_check
      _
    $region3: #{tpu_custom_call.1} parent=1 // pred_check_branch
      %10 = sbr.rel (0) target = $region5
    $region4: #{tpu_custom_call.1} parent=1 // pred_region
      %s12 = ssub.s32 64, 64
      %13 = vsyncadd [#allocation4], %s12
      %s15 = sshll.u32 [#allocation3], 4
      %s16 = int_to_ptr.vmem [resolvable:$true] %s15
      %18 = dma.hbm_to_vmem [thread:$0]  %s0, 64, %s16, [#allocation4]
    $region5: #{tpu_custom_call.1} parent=1 // pred_fallthru
      _
    // Predicated region
    $region6: #{tpu_custom_call.1} parent=1 // pred_check
      _
    $region7: #{tpu_custom_call.1} parent=1 // pred_check_branch
      %20 = sbr.rel (0) target = $region9
    $region8: #{tpu_custom_call.1} parent=1 // pred_region
      %s22 = ssub.s32 512, 512
      %23 = vsyncadd [#allocation6], %s22
      %s24 = sshll.u32 [#allocation5], 4
      %s25 = int_to_ptr.vmem [resolvable:$true] %s24
      %30 = dma.hbm_to_vmem [thread:$0]  %s1, 512, %s25, [#allocation6], 256, 256, 16
    $region9: #{tpu_custom_call.1} parent=1 // pred_fallthru
      _
    // Predicated region
    $region10: #{tpu_custom_call.1} parent=1 // pred_check
      _
    $region11: #{tpu_custom_call.1} parent=1 // pred_check_branch
      %32 = sbr.rel (0) target = $region13
    $region12: #{tpu_custom_call.1} parent=1 // pred_region
      %33 = dma.done [#allocation4], 64
    $region13: #{tpu_custom_call.1} parent=1 // pred_fallthru
      _
    // Predicated region
    $region14: #{tpu_custom_call.1} parent=1 // pred_check
      _
    $region15: #{tpu_custom_call.1} parent=1 // pred_check_branch
      %35 = sbr.rel (0) target = $region17
    $region16: #{tpu_custom_call.1} parent=1 // pred_region
      %36 = dma.done [#allocation6], 512
    $region17: #{tpu_custom_call.1} parent=1 // pred_fallthru
      _
    %p37 = scmp.eq.s32.totalorder 0, 0
    // Predicated region
    $region18: #{tpu_custom_call.1} parent=1 // pred_check
      %p38 = pneg %p37
    $region19: #{tpu_custom_call.1} parent=1 // pred_check_branch
      %40 = sbr.rel (%p38) target = $region21
    $region20: #{tpu_custom_call.1} parent=1 // pred_region
      %vm41 = vcmask 7168
      %42 = vst.msk [vmem:[#allocation2] sm:$0xff] %vm41, 0.0
      %43 = vst.msk [vmem:[#allocation2 + $0x8] sm:$0xff] %vm41, 0.0
    $region21: #{tpu_custom_call.1} parent=1 // pred_fallthru
      _
    %v44 = vld [vmem:[#allocation3] sm:$0xf]
    %v45 = vmul.f32 %v44, %v44
    %v47 = vrot.slane %v45, 7
    %v48 = vrot.slane %v47, 2
    %v50 = vadd.f32 %v45, %v48
    %v51 = vld [vmem:[#allocation2] sm:$0xff]
    %v52 = vld [vmem:[#allocation2 + $0x8] sm:$0xff]
    %v53 = vld [vmem:[#allocation5] sm:$0xff]
    %v54 = vld [vmem:[#allocation5 + $0x8] sm:$0xff]
    %v55 = vld [vmem:[#allocation5 + $0x10] sm:$0xff]
    %v56 = vld [vmem:[#allocation5 + $0x18] sm:$0xff]
    %v58 = vlaneseq
    %v59 = vshrl.u32 %v58, 7
    %v60 = vsub.s32 0, %v59
    %v61 = vrot.slane %v50, %v60
    %v62 = vlaneseq
    %v63 = vshrl.u32 %v62, 7
    %v64 = vsub.s32 2, %v63
    %v65 = vrot.slane %v50, %v64
    %v68 = vlaneseq
    %v69 = vshrl.u32 %v68, 7
    %v70 = vsub.s32 0, %v69
    %v71 = vrot.slane %v61, %v70
    %v72 = vlaneseq
    %v73 = vshrl.u32 %v72, 7
    %v74 = vsub.s32 0, %v73
    %v75 = vrot.slane %v65, %v74
    %v76 = vmul.f32 %v53, %v71
    %v77 = vmul.f32 %v54, %v75
    %v78 = vmul.f32 %v55, %v71
    %v79 = vmul.f32 %v56, %v75
    %v80 = vadd.f32 %v76, %v77
    %81 = vadd.xlane.f32.xlu0 %v80
    %v82 = vpop.xlane.xlu0 %81
    %v83 = vadd.f32 %v78, %v79
    %84 = vadd.xlane.f32.xlu0 %v83
    %v85 = vpop.xlane.xlu0 %84
    %v86 = vadd.f32 %v51, %v82
    %v87 = vadd.f32 %v52, %v85
    %vm88 = vcmask 7168
    %89 = vst.msk [vmem:[#allocation2] sm:$0xff] %vm88, %v86
    %90 = vst.msk [vmem:[#allocation2 + $0x8] sm:$0xff] %vm88, %v87
    // Predicated region
    $region22: #{tpu_custom_call.1} parent=1 // pred_check
      %p91 = pneg %p37
    $region23: #{tpu_custom_call.1} parent=1 // pred_check_branch
      %93 = sbr.rel (%p91) target = $region25
    $region24: #{tpu_custom_call.1} parent=1 // pred_region
      %v94 = vld [vmem:[#allocation2] sm:$0xff]
      %v95 = vld [vmem:[#allocation2 + $0x8] sm:$0xff]
      %v96 = vmul.f32 %v94, 9.894647e-05
      %v97 = vmul.f32 %v95, 9.894647e-05
      %98 = vst.msk [vmem:[%s2] sm:$0xff] %vm88, %v96
      %99 = vst.msk [vmem:[%s2 + $0x8] sm:$0xff] %vm88, %v97
    $region25: #{tpu_custom_call.1} parent=1 // pred_fallthru
      _
    // Predicated region
    $region26: #{tpu_custom_call.1} parent=1 // pred_check
      _
    $region27: #{tpu_custom_call.1} parent=1 // pred_check_branch
      %101 = sbr.rel (0) target = $region29
    $region28: #{tpu_custom_call.1} parent=1 // pred_region
      _
    $region29: #{tpu_custom_call.1} parent=1 // pred_fallthru
      _
    // Predicated region
    $region30: #{tpu_custom_call.1} parent=1 // pred_check
      _
    $region31: #{tpu_custom_call.1} parent=1 // pred_check_branch
      %103 = sbr.rel (0) target = $region33
    $region32: #{tpu_custom_call.1} parent=1 // pred_region
      _
    $region33: #{tpu_custom_call.1} parent=1 // pred_fallthru
      _
    %104 = vsyncpa [#allocation4], 1
    %105 = vsyncpa [#allocation6], 1

</llo_original>
